<compile_context>
chip_gen: v7x
topology: tpu7x:2x2x1
jax: 0.10.0
libtpu: 0.0.40
codegen_flags: <defaults>
</compile_context>

<pallas_src>
import functools

import jax
import jax.numpy as jnp
from jax.experimental import pallas as pl
from jax.experimental.pallas import tpu as pltpu

_LANE = 128
_SUBLANE = 8
_TARGET_TILE_BYTES = 4 * 1024 * 1024   # per-input per-step tile (v7x-safe)
_VMEM_LIMIT_BYTES = 32 * 1024 * 1024   # 2 inputs x 2 buffers x 4 MiB + slack


def _cdiv(a, b):
    return -(-a // b)


def _round_up(a, b):
    return _cdiv(a, b) * b


def _num_tensorcores():
    """Best-effort TensorCores-per-chip (2 on v7x, 1 on v5e/v6e)."""
    try:
        info = pltpu.get_tpu_info()
        for attr in ("num_cores", "num_tensorcores", "tensorcores_per_chip",
                     "cores_per_chip"):
            v = getattr(info, attr, None)
            if isinstance(v, int) and v > 0:
                return v
    except Exception:
        pass
    try:
        kind = jax.devices()[0].device_kind.lower()
        if "v7" in kind or "7x" in kind:
            return 2
    except Exception:
        pass
    return 1


def _rmse_partial_kernel(yhat_ref, y_ref, out_ref, *,
                         rows, block_rows, steps, need_mask):
    s = pl.program_id(0)   # split axis (sharded across TCs on v7x)
    j = pl.program_id(1)   # sequential reduction axis

    @pl.when(j == 0)
    def _():
        out_ref[...] = jnp.zeros_like(out_ref)

    # Stream in native dtype; cast to f32 in-kernel (halves HBM bytes for bf16).
    d = yhat_ref[...].astype(jnp.float32) - y_ref[...].astype(jnp.float32)
    d2 = d * d

    def _accumulate(vals):
        # (block_rows, 128) -> (block_rows//8, 8, 128) groups whole vregs, so
        # the sum over axis 0 is pure vreg-wise VALU adds (no XLU).  The
        # resident accumulator is the single (8, 128) output tile.
        out_ref[...] += vals.reshape(
            block_rows // _SUBLANE, _SUBLANE, _LANE).sum(axis=0)

    if need_mask:
        logical_block = s * steps + j
        is_edge = (logical_block + 1) * block_rows > rows

        @pl.when(jnp.logical_not(is_edge))
        def _():
            _accumulate(d2)

        @pl.when(is_edge)
        def _():
            # Zero rows past the end of the input (partial last block) and the
            # clamped out-of-range logical blocks.  Only runs on edge blocks;
            # the common steps stay pure loads + 3 VALU ops per vreg.
            row_ids = (jax.lax.broadcasted_iota(jnp.int32, d2.shape, 0)
                       + logical_block * block_rows)
            _accumulate(jnp.where(row_ids < rows, d2, jnp.float32(0.0)))
    else:
        _accumulate(d2)


def _sum_sq_diff_pallas(yf, xf, rows):
    """Sum of squared differences over a pair of (rows, 128) arrays."""
    itemsize = max(jnp.dtype(yf.dtype).itemsize, jnp.dtype(xf.dtype).itemsize)
    # Size the tile in bytes, not rows, so bf16 inputs get 2x rows per step.
    target_rows = max(
        _SUBLANE,
        (_TARGET_TILE_BYTES // (_LANE * itemsize)) // _SUBLANE * _SUBLANE)
    block_rows = min(target_rows, _round_up(rows, _SUBLANE))
    num_blocks = _cdiv(rows, block_rows)

    # Split the reduction across TensorCores only where it helps (v7x).
    num_tc = _num_tensorcores()
    nsplit = num_tc if (num_tc > 1 and num_blocks >= 2 * num_tc) else 1
    steps = _cdiv(num_blocks, nsplit)
    need_mask = (nsplit * steps * block_rows) != rows

    def in_index_map(s, j):
        # Clamp: out-of-range logical blocks re-read the last block; the
        # in-kernel mask zeroes their contribution.
        return (jnp.minimum(s * steps + j, num_blocks - 1), 0)

    kernel = functools.partial(
        _rmse_partial_kernel,
        rows=rows, block_rows=block_rows, steps=steps, need_mask=need_mask)

    n_main = rows * _LANE
    bytes_accessed = (n_main * (jnp.dtype(yf.dtype).itemsize
                                + jnp.dtype(xf.dtype).itemsize)
                      + nsplit * _SUBLANE * _LANE * 4)
    cost = pl.CostEstimate(flops=3 * n_main, transcendentals=0,
                           bytes_accessed=bytes_accessed)

    partial_sums = pl.pallas_call(
        kernel,
        out_shape=jax.ShapeDtypeStruct((nsplit * _SUBLANE, _LANE), jnp.float32),
        grid_spec=pltpu.PrefetchScalarGridSpec(
            num_scalar_prefetch=0,
            grid=(nsplit, steps),
            in_specs=[
                pl.BlockSpec((block_rows, _LANE), in_index_map),
                pl.BlockSpec((block_rows, _LANE), in_index_map),
            ],
            out_specs=pl.BlockSpec((_SUBLANE, _LANE), lambda s, j: (s, 0)),
        ),
        compiler_params=pltpu.CompilerParams(
            dimension_semantics=("parallel", "arbitrary"),
            vmem_limit_bytes=_VMEM_LIMIT_BYTES),
        cost_estimate=cost,
    )(yf, xf)

    # Single cross-lane/sublane reduction (tiny), done outside the kernel.
    return jnp.sum(partial_sums)


def rmse_loss(yhat, y, eps=1e-6, min_pallas_elems=1 << 20):
    """sqrt(mean((yhat - y)**2) + eps), with the reduction done in Pallas."""
    assert yhat.shape == y.shape, "yhat and y must have the same shape"
    n_elems = yhat.size
    eps_f = jnp.float32(eps)

    def _plain_sq_sum(a, b):
        d = a.astype(jnp.float32) - b.astype(jnp.float32)
        return jnp.sum(d * d)

    yf = jnp.ravel(yhat)
    xf = jnp.ravel(y)

    tail = n_elems % _LANE
    aligned = n_elems - tail
    rows = aligned // _LANE

    # Tiny-input fast path: the kernel only pays off once the tensor is large
    # enough to be bandwidth-bound.
    if n_elems < min_pallas_elems or rows == 0:
        return jnp.sqrt(_plain_sq_sum(yf, xf) / jnp.float32(n_elems) + eps_f)

    total_sq = jnp.float32(0.0)
    if tail:
        # <128-element tail: plain-JAX epilogue (reads at most 127 elements).
        # Typical NN tensor sizes are multiples of 128 and skip this branch
        # entirely (zero-copy flatten + reshape).
        # TODO(synk): for very large misaligned inputs, stream the flat arrays
        # with an element-granular mask instead of slicing the aligned prefix.
        total_sq = total_sq + _plain_sq_sum(yf[aligned:], xf[aligned:])
        yf = jax.lax.slice(yf, (0,), (aligned,))
        xf = jax.lax.slice(xf, (0,), (aligned,))

    yf = yf.reshape(rows, _LANE)
    xf = xf.reshape(rows, _LANE)

    total_sq = total_sq + _sum_sq_diff_pallas(yf, xf, rows)
    return jnp.sqrt(total_sq / jnp.float32(n_elems) + eps_f)


if __name__ == "__main__":
    key = jax.random.PRNGKey(0)
    k1, k2, k3, k4 = jax.random.split(key, 4)

    # Small NCHW-style regression tensors, consistent with the module.
    yhat = jax.random.normal(k1, (2, 4, 16, 16), dtype=jnp.float32)
    y = jax.random.normal(k2, (2, 4, 16, 16), dtype=jnp.float32)

    loss = rmse_loss(yhat, y, min_pallas_elems=0)   # force the kernel path
    jax.block_until_ready(loss)
    ref = jnp.sqrt(jnp.mean((yhat - y) ** 2) + 1e-6)
    assert jnp.allclose(loss, ref, rtol=1e-5, atol=1e-6), (loss, ref)

    # Misaligned (non-multiple-of-128) bf16 case: exercises the gated in-kernel
    # row mask and the plain-JAX tail epilogue.
    yhat2 = jax.random.normal(k3, (2, 5, 13, 17), dtype=jnp.bfloat16)
    y2 = jax.random.normal(k4, (2, 5, 13, 17), dtype=jnp.bfloat16)
    loss2 = rmse_loss(yhat2, y2, min_pallas_elems=0)
    jax.block_until_ready(loss2)
    d2 = yhat2.astype(jnp.float32) - y2.astype(jnp.float32)
    ref2 = jnp.sqrt(jnp.mean(d2 * d2) + 1e-6)
    assert jnp.allclose(loss2, ref2, rtol=1e-4, atol=1e-5), (loss2, ref2)

    print("KERNEL_OK")
</pallas_src>

<mosaic_0001>
module attributes {stable_mosaic.version = 11 : i64} {
  func.func @_rmse_partial_kernel(%arg0: i32, %arg1: i32, %arg2: memref<16x128xf32, #tpu.memory_space<vmem>>, %arg3: memref<16x128xf32, #tpu.memory_space<vmem>>, %arg4: memref<8x128xf32, #tpu.memory_space<vmem>>) attributes {dimension_semantics = [#tpu.dimension_semantics<parallel>, #tpu.dimension_semantics<arbitrary>], iteration_bounds = array<i64: 1, 1>, scalar_prefetch = 0 : i64, scratch_operands = 0 : i64, tpu.core_type = #tpu.core_type<tc>, window_params = [{transform_indices = @transform_0, window_bounds = array<i64: 16, 128>}, {transform_indices = @transform_1, window_bounds = array<i64: 16, 128>}, {transform_indices = @transform_2, window_bounds = array<i64: 8, 128>}]} {
    %c0_i32 = arith.constant 0 : i32
    %0 = arith.cmpi eq, %arg1, %c0_i32 : i32
    %1 = arith.extui %0 : i1 to i32
    %c0_i32_0 = arith.constant 0 : i32
    %2 = arith.cmpi ne, %1, %c0_i32_0 : i32
    scf.if %2 {
      %cst_8 = arith.constant 0.000000e+00 : f32
      %12 = vector.broadcast %cst_8 : f32 to vector<8x128xf32>
      %c0_9 = arith.constant 0 : index
      %c0_10 = arith.constant 0 : index
      %13 = vector.load %arg4[%c0_9, %c0_10] : memref<8x128xf32, #tpu.memory_space<vmem>>, vector<8x128xf32>
      tpu.vector_store %arg4[%c0_9, %c0_10], %12 {strides = array<i32>} : memref<8x128xf32, #tpu.memory_space<vmem>>, vector<8x128xf32>,
    } else {
    }
    %c0 = arith.constant 0 : index
    %c0_1 = arith.constant 0 : index
    %3 = vector.load %arg2[%c0, %c0_1] : memref<16x128xf32, #tpu.memory_space<vmem>>, vector<16x128xf32>
    %c0_2 = arith.constant 0 : index
    %c0_3 = arith.constant 0 : index
    %4 = vector.load %arg3[%c0_2, %c0_3] : memref<16x128xf32, #tpu.memory_space<vmem>>, vector<16x128xf32>
    %5 = arith.subf %3, %4 : vector<16x128xf32>
    %6 = arith.mulf %5, %5 : vector<16x128xf32>
    %c0_4 = arith.constant 0 : index
    %c0_5 = arith.constant 0 : index
    %7 = vector.load %arg4[%c0_4, %c0_5] : memref<8x128xf32, #tpu.memory_space<vmem>>, vector<8x128xf32>
    %8 = vector.shape_cast %6 : vector<16x128xf32> to vector<2x8x128xf32>
    %cst = arith.constant dense<0.000000e+00> : vector<8x128xf32>
    %9 = vector.multi_reduction <add>, %8, %cst [0] : vector<2x8x128xf32> to vector<8x128xf32>
    %10 = arith.addf %7, %9 : vector<8x128xf32>
    %c0_6 = arith.constant 0 : index
    %c0_7 = arith.constant 0 : index
    %11 = vector.load %arg4[%c0_6, %c0_7] : memref<8x128xf32, #tpu.memory_space<vmem>>, vector<8x128xf32>
    tpu.vector_store %arg4[%c0_6, %c0_7], %10 {strides = array<i32>} : memref<8x128xf32, #tpu.memory_space<vmem>>, vector<8x128xf32>,
    return
  }
  func.func @transform_0(%arg0: i32, %arg1: i32) -> (i32, i32) {
    %c1_i32 = arith.constant 1 : i32
    %0 = arith.muli %arg0, %c1_i32 : i32
    %1 = arith.addi %0, %arg1 : i32
    %c0_i32 = arith.constant 0 : i32
    %2 = arith.minsi %1, %c0_i32 : i32
    %c0_i32_0 = arith.constant 0 : i32
    %c0_i32_1 = arith.constant 0 : i32
    return %2, %c0_i32_0 : i32, i32
  }
  func.func @transform_1(%arg0: i32, %arg1: i32) -> (i32, i32) {
    %c1_i32 = arith.constant 1 : i32
    %0 = arith.muli %arg0, %c1_i32 : i32
    %1 = arith.addi %0, %arg1 : i32
    %c0_i32 = arith.constant 0 : i32
    %2 = arith.minsi %1, %c0_i32 : i32
    %c0_i32_0 = arith.constant 0 : i32
    %c0_i32_1 = arith.constant 0 : i32
    return %2, %c0_i32_0 : i32, i32
  }
  func.func @transform_2(%arg0: i32, %arg1: i32) -> (i32, i32) {
    %c0_i32 = arith.constant 0 : i32
    %c0_i32_0 = arith.constant 0 : i32
    return %arg0, %c0_i32 : i32, i32
  }
}

</mosaic_0001>

<llo_original>
// kernel: tpu_custom_call.1
$region0: #{tpu_custom_call.1}
  #allocation0 [shape = 'u32[]', space=smem, size = 0x4, offset = 0x4, fixed_abs, tag = 'smem constant byte address 0x4 - core index']
  #allocation1 [shape = 'u32[144,128]{1,0:T(1,128)}', space=vmem, size = 0x12000, scoped, tag = 'internal scratch']
  %s0 = inlined_call_operand.hbm [shape: f32[16,128], index: 0, kind: input, shape index: {}]
  %s1 = inlined_call_operand.hbm [shape: f32[16,128], index: 1, kind: input, shape index: {}]
  %s2 = inlined_call_operand.hbm [shape: f32[8,128], index: 2, kind: output, shape index: {}]
  %s3 = sld [smem:[#allocation0]]
  $region30: #{tpu_custom_call.1} parent=0
    _
  %s5 = ssub.s32 1, %s3
  %s6 = scalar_select 0, %s5, %s3
  $region1: #{tpu_custom_call.1} parent=0
    #allocation2 [shape = 'u8[8192]{0}', space=vmem, size = 0x2000, scoped, tag = 'input window, operand 0, single buffered']
    #allocation3 [shape = 's32[1]{0}', space=sflag, size = 0x4, scoped, tag = 'scoped memory for tpu_custom_call.1']
    #allocation4 [shape = 's32[1]{0}', space=sflag, size = 0x4, scoped, tag = 'scoped memory for tpu_custom_call.1']
    #allocation5 [shape = 'u8[8192]{0}', space=vmem, size = 0x2000, scoped, tag = 'input window, operand 1, single buffered']
    #allocation6 [shape = 's32[1]{0}', space=sflag, size = 0x4, scoped, tag = 'scoped memory for tpu_custom_call.1']
    #allocation7 [shape = 'u8[4096]{0}', space=vmem, size = 0x1000, scoped, tag = 'output window, operand 0, single buffered']
    %7 = vsyncpa [#allocation3], 0
    %8 = vsyncpa [#allocation6], 0
    %9 = vsyncpa [#allocation4], 0
    // Predicated region
    $region2: #{tpu_custom_call.1} parent=1 // pred_check
      _
    $region3: #{tpu_custom_call.1} parent=1 // pred_check_branch
      %11 = sbr.rel (0) target = $region5
    $region4: #{tpu_custom_call.1} parent=1 // pred_region
      %s12 = sadd.s32 0, 0
      %p13 = scmp.lt.s32.totalorder %s12, 0
      %s14 = scalar_select %p13, %s12, 0
      %s15 = smul.u32 2, %s14
      %s17 = ssub.s32 256, 256
      %18 = vsyncadd [#allocation3], %s17
      %s19 = smul.addr %s15, 128
      %s20 = scalar_lea.hbm %s0, %s19
      %s21 = sshll.u32 [#allocation2], 4
      %s22 = int_to_ptr.vmem [resolvable:$true] %s21
      %27 = dma.hbm_to_vmem [thread:$0]  %s20, 256, %s22, [#allocation3], 128, 128, 8
    $region5: #{tpu_custom_call.1} parent=1 // pred_fallthru
      _
    // Predicated region
    $region6: #{tpu_custom_call.1} parent=1 // pred_check
      _
    $region7: #{tpu_custom_call.1} parent=1 // pred_check_branch
      %29 = sbr.rel (0) target = $region9
    $region8: #{tpu_custom_call.1} parent=1 // pred_region
      %s30 = sadd.s32 0, 0
      %p31 = scmp.lt.s32.totalorder %s30, 0
      %s32 = scalar_select %p31, %s30, 0
      %s33 = smul.u32 2, %s32
      %s35 = ssub.s32 256, 256
      %36 = vsyncadd [#allocation6], %s35
      %s37 = smul.addr %s33, 128
      %s38 = scalar_lea.hbm %s1, %s37
      %s39 = sshll.u32 [#allocation5], 4
      %s40 = int_to_ptr.vmem [resolvable:$true] %s39
      %45 = dma.hbm_to_vmem [thread:$0]  %s38, 256, %s40, [#allocation6], 128, 128, 8
    $region9: #{tpu_custom_call.1} parent=1 // pred_fallthru
      _
    // Predicated region
    $region10: #{tpu_custom_call.1} parent=1 // pred_check
      _
    $region11: #{tpu_custom_call.1} parent=1 // pred_check_branch
      %47 = sbr.rel (0) target = $region13
    $region12: #{tpu_custom_call.1} parent=1 // pred_region
      %48 = dma.done [#allocation3], 256
    $region13: #{tpu_custom_call.1} parent=1 // pred_fallthru
      _
    // Predicated region
    $region14: #{tpu_custom_call.1} parent=1 // pred_check
      _
    $region15: #{tpu_custom_call.1} parent=1 // pred_check_branch
      %50 = sbr.rel (0) target = $region17
    $region16: #{tpu_custom_call.1} parent=1 // pred_region
      %51 = dma.done [#allocation6], 256
    $region17: #{tpu_custom_call.1} parent=1 // pred_fallthru
      _
    %s52 = sadd.s32 0, 0
    %p53 = scmp.lt.s32.totalorder %s52, 0
    %s54 = scalar_select %p53, %s52, 0
    %s55 = smul.u32 2, %s54
    %s56 = sadd.s32 0, 0
    %p57 = scmp.lt.s32.totalorder %s56, 0
    %s58 = scalar_select %p57, %s56, 0
    %s59 = smul.u32 2, %s58
    %p60 = scmp.eq.s32.totalorder 0, 0
    // Predicated region
    $region18: #{tpu_custom_call.1} parent=1 // pred_check
      %p61 = pneg %p60
    $region19: #{tpu_custom_call.1} parent=1 // pred_check_branch
      %63 = sbr.rel (%p61) target = $region21
    $region20: #{tpu_custom_call.1} parent=1 // pred_region
      %64 = vst [vmem:[#allocation7] sm:$0xff] 0.0
    $region21: #{tpu_custom_call.1} parent=1 // pred_fallthru
      _
    %v65 = vld [vmem:[#allocation2] sm:$0xff]
    %v66 = vld [vmem:[#allocation2 + $0x8] sm:$0xff]
    %v67 = vld [vmem:[#allocation5] sm:$0xff]
    %v68 = vld [vmem:[#allocation5 + $0x8] sm:$0xff]
    %v69 = vsub.f32 %v65, %v67
    %v70 = vsub.f32 %v66, %v68
    %v71 = vmul.f32 %v69, %v69
    %v72 = vmul.f32 %v70, %v70
    %v73 = vld [vmem:[#allocation7] sm:$0xff]
    %v74 = vadd.f32 %v71, %v72
    %v75 = vadd.f32 %v73, %v74
    %76 = vst [vmem:[#allocation7] sm:$0xff] %v75
    // Predicated region
    $region22: #{tpu_custom_call.1} parent=1 // pred_check
      _
    $region23: #{tpu_custom_call.1} parent=1 // pred_check_branch
      %78 = sbr.rel (0) target = $region25
    $region24: #{tpu_custom_call.1} parent=1 // pred_region
      %s80 = ssub.s32 128, 128
      %81 = vsyncadd [#allocation4], %s80
      %s83 = sshll.u32 [#allocation7], 4
      %s84 = int_to_ptr.vmem [resolvable:$true] %s83
      %86 = dma.vmem_to_hbm [thread:$0]  %s84, 128, %s2, [#allocation4]
    $region25: #{tpu_custom_call.1} parent=1 // pred_fallthru
      _
    // Predicated region
    $region26: #{tpu_custom_call.1} parent=1 // pred_check
      _
    $region27: #{tpu_custom_call.1} parent=1 // pred_check_branch
      %88 = sbr.rel (0) target = $region29
    $region28: #{tpu_custom_call.1} parent=1 // pred_region
      %89 = dma.done [#allocation4], 128
    $region29: #{tpu_custom_call.1} parent=1 // pred_fallthru
      _
    %90 = vsyncpa [#allocation3], 1
    %91 = vsyncpa [#allocation6], 1
    %92 = vsyncpa [#allocation4], 1

</llo_original>
